<compile_context>
chip_gen: v7x
topology: tpu7x:2x2x1
jax: 0.10.0
libtpu: 0.0.40
codegen_flags: <defaults>
</compile_context>

<pallas_src>
import jax
import jax.numpy as jnp
from jax.experimental import pallas as pl
from jax.experimental.pallas import tpu as pltpu

_LANE = 128
_VMEM_LIMIT_BYTES = 32 * 1024 * 1024  # safe on v5e/v6e (128 MiB phys) and v7x (64 MiB phys)


def _largest_divisor_leq(n, cap):
    cap = max(1, min(n, cap))
    for d in range(cap, 0, -1):
        if n % d == 0:
            return d
    return 1


# --------------------------------------------------------------------------------------
# Path A: fused kernel, full L resident, multiple batch elements per grid step.
# --------------------------------------------------------------------------------------
def _make_fused_kernel(C, Cr, L_true):
    inv_L = 1.0 / float(L_true)

    def kernel(p_ref, x_ref, o_ref):
        x = x_ref[...]                                   # (Bt, C, Lp), native dtype
        xf = x.astype(jnp.float32)

        # unpack the packed parameter slab (static slices of a tiny array)
        p = p_ref[...]                                   # (Cr + C + 4, C), f32
        w1 = p[0:Cr, :]                                  # (Cr, C)
        w2 = p[Cr:Cr + C, 0:Cr]                          # (C, Cr)
        b1 = p[Cr + C:Cr + C + 1, 0:Cr]                  # (1, Cr)
        b2 = p[Cr + C + 1:Cr + C + 2, :]                 # (1, C)
        ws = p[Cr + C + 2:Cr + C + 3, :]                 # (1, C)
        bs = p[Cr + C + 3:Cr + C + 4, 0:1]               # (1, 1)

        # ---- cSE branch (f32 accumulation; padded zeros do not affect the sum) -------
        mean = jnp.sum(xf, axis=-1) * inv_L                                      # (Bt, C)
        z1 = jnp.maximum(
            jnp.sum(mean[:, None, :] * w1[None, :, :], axis=-1) + b1, 0.0)       # (Bt, Cr)
        cse = jax.nn.sigmoid(
            jnp.sum(z1[:, None, :] * w2[None, :, :], axis=-1) + b2)              # (Bt, C)

        # ---- sSE branch (per-position 1x1 conv over channels, VPU/XLU) ---------------
        s = jnp.sum(xf * ws[:, :, None], axis=1) + bs                            # (Bt, Lp)
        sse = jax.nn.sigmoid(s)                                                  # (Bt, Lp)

        # ---- fused combine: out = x * (cse + sse), in the native dtype ---------------
        gate = cse[:, :, None].astype(x.dtype) + sse[:, None, :].astype(x.dtype)  # (Bt, C, Lp)
        o_ref[...] = (x * gate).astype(o_ref.dtype)

    return kernel


# --------------------------------------------------------------------------------------
# Path B: cSE gate hoisted (tiny), Pallas kernel tiled over L for large C*L.
# --------------------------------------------------------------------------------------
def _make_apply_kernel(C):
    def kernel(g_ref, p_ref, x_ref, o_ref):
        x = x_ref[...]                                   # (Bt, C, Lt), native dtype
        xf = x.astype(jnp.float32)

        g = g_ref[...]                                   # (Bt, C, 1), f32 (sigmoided cSE gate)
        p = p_ref[...]                                   # (2, C), f32
        ws = p[0:1, :]                                   # (1, C)
        bs = p[1:2, 0:1]                                 # (1, 1)

        s = jnp.sum(xf * ws[:, :, None], axis=1) + bs    # (Bt, Lt)
        sse = jax.nn.sigmoid(s)

        gate = g.astype(x.dtype) + sse[:, None, :].astype(x.dtype)   # (Bt, C, Lt)
        o_ref[...] = (x * gate).astype(o_ref.dtype)

    return kernel


def scse_block(x, w1, b1, w2, b2, ws, bs, *,
               max_block_bytes=2 * 1024 * 1024, force_tiled=False):
    """x: (N, C, L).  Weights follow PyTorch Conv1d conventions (kernel dim squeezed)."""
    N, C, L = x.shape
    Cr = w1.shape[0]
    assert Cr >= 1 and Cr <= C

    ws_vec = jnp.reshape(ws, (C,)).astype(jnp.float32)
    bs_s = jnp.reshape(bs, (-1,))[0].astype(jnp.float32)

    # Pad L to a lane-dense multiple of 128 (masked sub-128 stores are ~4.5x slower).
    L_pad = ((L + _LANE - 1) // _LANE) * _LANE
    x_p = x if L_pad == L else jnp.pad(x, ((0, 0), (0, 0), (0, L_pad - L)))

    itemsize = jnp.dtype(x.dtype).itemsize
    per_batch_bytes = C * L_pad * itemsize
    use_fused = (not force_tiled) and (per_batch_bytes <= max_block_bytes)

    if use_fused:
        # ---- pack all parameters into one f32 slab (single VMEM window) -------------
        slab = jnp.zeros((Cr + C + 4, C), jnp.float32)
        slab = slab.at[0:Cr, :].set(w1.astype(jnp.float32))
        slab = slab.at[Cr:Cr + C, 0:Cr].set(w2.astype(jnp.float32))
        slab = slab.at[Cr + C, 0:Cr].set(b1.astype(jnp.float32))
        slab = slab.at[Cr + C + 1, :].set(b2.astype(jnp.float32))
        slab = slab.at[Cr + C + 2, :].set(ws_vec)
        slab = slab.at[Cr + C + 3, 0].set(bs_s)

        # batch aggregation: target ~max_block_bytes per block, but keep >= 2 grid
        # steps when N > 1 so both v7x TensorCores get work.
        bt_budget = max(1, max_block_bytes // per_batch_bytes)
        if N > 1:
            bt_budget = min(bt_budget, max(1, N // 2))
        Bt = _largest_divisor_leq(N, bt_budget)
        grid = (N // Bt,)

        out_p = pl.pallas_call(
            _make_fused_kernel(C, Cr, L),
            out_shape=jax.ShapeDtypeStruct((N, C, L_pad), x.dtype),
            grid=grid,
            in_specs=[
                pl.BlockSpec((Cr + C + 4, C), lambda n: (0, 0)),      # packed params
                pl.BlockSpec((Bt, C, L_pad), lambda n: (n, 0, 0)),    # x
            ],
            out_specs=pl.BlockSpec((Bt, C, L_pad), lambda n: (n, 0, 0)),
            compiler_params=pltpu.CompilerParams(
                dimension_semantics=("parallel",),
                vmem_limit_bytes=_VMEM_LIMIT_BYTES),
        )(slab, x_p)
    else:
        # ---- cSE gate hoisted: tiny mean + two matvecs in plain XLA (f32) -----------
        mean = jnp.mean(x.astype(jnp.float32), axis=-1)                      # (N, C)
        z1 = jnp.maximum(mean @ w1.astype(jnp.float32).T
                         + b1.astype(jnp.float32)[None, :], 0.0)             # (N, Cr)
        g = jax.nn.sigmoid(z1 @ w2.astype(jnp.float32).T
                           + b2.astype(jnp.float32)[None, :])                # (N, C)
        g3 = g[:, :, None]                                                   # (N, C, 1)

        pslab = jnp.zeros((2, C), jnp.float32)
        pslab = pslab.at[0, :].set(ws_vec)
        pslab = pslab.at[1, 0].set(bs_s)

        Bt = 1
        # largest multiple-of-128 divisor of L_pad fitting the block budget
        lt_budget_elems = max(_LANE, max_block_bytes // (Bt * C * itemsize))
        m = L_pad // _LANE
        kt = 1
        for k in range(m, 0, -1):
            if m % k == 0 and k * _LANE <= lt_budget_elems:
                kt = k
                break
        Lt = kt * _LANE
        grid = (N // Bt, L_pad // Lt)

        out_p = pl.pallas_call(
            _make_apply_kernel(C),
            out_shape=jax.ShapeDtypeStruct((N, C, L_pad), x.dtype),
            grid=grid,
            in_specs=[
                pl.BlockSpec((Bt, C, 1), lambda b, l: (b, 0, 0)),     # cSE gate
                pl.BlockSpec((2, C), lambda b, l: (0, 0)),            # packed sSE params
                pl.BlockSpec((Bt, C, Lt), lambda b, l: (b, 0, l)),    # x tile
            ],
            out_specs=pl.BlockSpec((Bt, C, Lt), lambda b, l: (b, 0, l)),
            compiler_params=pltpu.CompilerParams(
                dimension_semantics=("parallel", "parallel"),
                vmem_limit_bytes=_VMEM_LIMIT_BYTES),
        )(g3, pslab, x_p)

    return out_p if L_pad == L else out_p[:, :, :L]


def scse_reference(x, w1, b1, w2, b2, ws, bs):
    """Pure-JAX reference mirroring the PyTorch module."""
    mean = jnp.mean(x, axis=-1, keepdims=True)                       # (N, C, 1)
    z1 = jnp.maximum(jnp.einsum('rc,ncl->nrl', w1, mean) + b1[None, :, None], 0.0)
    cse = jax.nn.sigmoid(jnp.einsum('cr,nrl->ncl', w2, z1) + b2[None, :, None])
    sse = jax.nn.sigmoid(jnp.einsum('c,ncl->nl', ws.reshape(-1), x)[:, None, :] + bs)
    return x * cse + x * sse


if __name__ == "__main__":
    C, reduction = 32, 16
    Cr = C // reduction

    key = jax.random.PRNGKey(0)
    kx1, kx2, kx3, k1, k2, k3, k4, k5, k6 = jax.random.split(key, 9)

    # Deterministic synthetic parameters (PyTorch Conv1d weight shapes, kernel dim squeezed).
    w1 = 0.1 * jax.random.normal(k1, (Cr, C), dtype=jnp.float32)   # Conv1d(C, Cr, 1).weight
    b1 = 0.1 * jax.random.normal(k2, (Cr,), dtype=jnp.float32)
    w2 = 0.1 * jax.random.normal(k3, (C, Cr), dtype=jnp.float32)   # Conv1d(Cr, C, 1).weight
    b2 = 0.1 * jax.random.normal(k4, (C,), dtype=jnp.float32)
    ws = 0.1 * jax.random.normal(k5, (1, C), dtype=jnp.float32)    # Conv1d(C, 1, 1).weight
    bs = 0.1 * jax.random.normal(k6, (1,), dtype=jnp.float32)

    def check(out, x):
        out = jax.block_until_ready(out)
        ref = scse_reference(x, w1, b1, w2, b2, ws, bs)
        assert out.shape == x.shape
        assert jnp.allclose(out, ref, atol=1e-5, rtol=1e-4), "mismatch vs. reference"

    # 1) fused path (batch-blocked, full L resident), lane-aligned L
    x1 = jax.random.normal(kx1, (2, C, 128), dtype=jnp.float32)
    check(scse_block(x1, w1, b1, w2, b2, ws, bs), x1)

    # 2) L-tiled path with hoisted cSE gate (forced small block budget -> 2x2 grid)
    x2 = jax.random.normal(kx2, (2, C, 256), dtype=jnp.float32)
    check(scse_block(x2, w1, b1, w2, b2, ws, bs,
                     max_block_bytes=16 * 1024, force_tiled=True), x2)

    # 3) non-multiple-of-128 L: wrapper pads to lane-dense tiles, mean uses true L
    x3 = jax.random.normal(kx3, (2, C, 100), dtype=jnp.float32)
    check(scse_block(x3, w1, b1, w2, b2, ws, bs), x3)

    print("KERNEL_OK")
</pallas_src>

<mosaic_0001>
module attributes {stable_mosaic.version = 11 : i64} {
  func.func @kernel(%arg0: i32, %arg1: memref<38x32xf32, #tpu.memory_space<vmem>>, %arg2: memref<1x32x128xf32, #tpu.memory_space<vmem>>, %arg3: memref<1x32x128xf32, #tpu.memory_space<vmem>>) attributes {dimension_semantics = [#tpu.dimension_semantics<parallel>], iteration_bounds = array<i64: 2>, scalar_prefetch = 0 : i64, scratch_operands = 0 : i64, tpu.core_type = #tpu.core_type<tc>, window_params = [{pipeline_mode = #tpu.pipeline_mode<synchronous>, transform_indices = @transform_0, window_bounds = array<i64: 38, 32>}, {transform_indices = @transform_1, window_bounds = array<i64: 1, 32, 128>}, {transform_indices = @transform_2, window_bounds = array<i64: 1, 32, 128>}]} {
    %c0 = arith.constant 0 : index
    %c0_0 = arith.constant 0 : index
    %c0_1 = arith.constant 0 : index
    %0 = vector.load %arg2[%c0, %c0_0, %c0_1] : memref<1x32x128xf32, #tpu.memory_space<vmem>>, vector<1x32x128xf32>
    %c0_2 = arith.constant 0 : index
    %c0_3 = arith.constant 0 : index
    %1 = vector.load %arg1[%c0_2, %c0_3] : memref<38x32xf32, #tpu.memory_space<vmem>>, vector<38x32xf32>
    %2 = vector.extract_strided_slice %1 {offsets = [0, 0], sizes = [2, 32], strides = [1, 1]} : vector<38x32xf32> to vector<2x32xf32>
    %3 = vector.extract_strided_slice %1 {offsets = [2, 0], sizes = [32, 2], strides = [1, 1]} : vector<38x32xf32> to vector<32x2xf32>
    %4 = vector.extract_strided_slice %1 {offsets = [34, 0], sizes = [1, 2], strides = [1, 1]} : vector<38x32xf32> to vector<1x2xf32>
    %5 = vector.extract_strided_slice %1 {offsets = [35, 0], sizes = [1, 32], strides = [1, 1]} : vector<38x32xf32> to vector<1x32xf32>
    %6 = vector.extract_strided_slice %1 {offsets = [36, 0], sizes = [1, 32], strides = [1, 1]} : vector<38x32xf32> to vector<1x32xf32>
    %7 = vector.extract_strided_slice %1 {offsets = [37, 0], sizes = [1, 1], strides = [1, 1]} : vector<38x32xf32> to vector<1x1xf32>
    %cst = arith.constant dense<0.000000e+00> : vector<1x32xf32>
    %8 = vector.multi_reduction <add>, %0, %cst [2] : vector<1x32x128xf32> to vector<1x32xf32>
    %cst_4 = arith.constant 7.812500e-03 : f32
    %9 = vector.broadcast %cst_4 : f32 to vector<1x32xf32>
    %10 = arith.mulf %8, %9 : vector<1x32xf32>
    %11 = vector.shape_cast %10 : vector<1x32xf32> to vector<1x1x32xf32>
    %12 = vector.shape_cast %2 : vector<2x32xf32> to vector<1x2x32xf32>
    %13 = vector.broadcast %11 : vector<1x1x32xf32> to vector<1x2x32xf32>
    %14 = arith.mulf %13, %12 : vector<1x2x32xf32>
    %cst_5 = arith.constant dense<0.000000e+00> : vector<1x2xf32>
    %15 = vector.multi_reduction <add>, %14, %cst_5 [2] : vector<1x2x32xf32> to vector<1x2xf32>
    %16 = arith.addf %15, %4 : vector<1x2xf32>
    %cst_6 = arith.constant 0.000000e+00 : f32
    %17 = vector.broadcast %cst_6 : f32 to vector<1x2xf32>
    %18 = arith.maximumf %16, %17 : vector<1x2xf32>
    %19 = vector.shape_cast %18 : vector<1x2xf32> to vector<1x1x2xf32>
    %20 = vector.shape_cast %3 : vector<32x2xf32> to vector<1x32x2xf32>
    %21 = vector.broadcast %19 : vector<1x1x2xf32> to vector<1x32x2xf32>
    %22 = arith.mulf %21, %20 : vector<1x32x2xf32>
    %cst_7 = arith.constant dense<0.000000e+00> : vector<1x32xf32>
    %23 = vector.multi_reduction <add>, %22, %cst_7 [2] : vector<1x32x2xf32> to vector<1x32xf32>
    %24 = arith.addf %23, %5 : vector<1x32xf32>
    %25 = arith.negf %24 : vector<1x32xf32>
    %26 = math.exp %25 : vector<1x32xf32>
    %cst_8 = arith.constant 1.000000e+00 : f32
    %27 = vector.broadcast %cst_8 : f32 to vector<1x32xf32>
    %28 = arith.addf %27, %26 : vector<1x32xf32>
    %29 = arith.divf %27, %28 : vector<1x32xf32>
    %30 = vector.shape_cast %6 : vector<1x32xf32> to vector<1x32x1xf32>
    %31 = vector.broadcast %30 : vector<1x32x1xf32> to vector<1x32x128xf32>
    %32 = arith.mulf %0, %31 : vector<1x32x128xf32>
    %cst_9 = arith.constant dense<0.000000e+00> : vector<1x128xf32>
    %33 = vector.multi_reduction <add>, %32, %cst_9 [1] : vector<1x32x128xf32> to vector<1x128xf32>
    %34 = vector.broadcast %7 : vector<1x1xf32> to vector<1x128xf32>
    %35 = arith.addf %33, %34 : vector<1x128xf32>
    %36 = arith.negf %35 : vector<1x128xf32>
    %37 = math.exp %36 : vector<1x128xf32>
    %cst_10 = arith.constant 1.000000e+00 : f32
    %38 = vector.broadcast %cst_10 : f32 to vector<1x128xf32>
    %39 = arith.addf %38, %37 : vector<1x128xf32>
    %40 = arith.divf %38, %39 : vector<1x128xf32>
    %41 = vector.shape_cast %29 : vector<1x32xf32> to vector<1x32x1xf32>
    %42 = vector.shape_cast %40 : vector<1x128xf32> to vector<1x1x128xf32>
    %43 = vector.broadcast %41 : vector<1x32x1xf32> to vector<1x32x128xf32>
    %44 = vector.broadcast %42 : vector<1x1x128xf32> to vector<1x32x128xf32>
    %45 = arith.addf %43, %44 : vector<1x32x128xf32>
    %46 = arith.mulf %0, %45 : vector<1x32x128xf32>
    %c0_11 = arith.constant 0 : index
    %c0_12 = arith.constant 0 : index
    %c0_13 = arith.constant 0 : index
    %47 = vector.load %arg3[%c0_11, %c0_12, %c0_13] : memref<1x32x128xf32, #tpu.memory_space<vmem>>, vector<1x32x128xf32>
    tpu.vector_store %arg3[%c0_11, %c0_12, %c0_13], %46 {strides = array<i32>} : memref<1x32x128xf32, #tpu.memory_space<vmem>>, vector<1x32x128xf32>,
    return
  }
  func.func @transform_0(%arg0: i32) -> (i32, i32) {
    %c0_i32 = arith.constant 0 : i32
    %c0_i32_0 = arith.constant 0 : i32
    %c0_i32_1 = arith.constant 0 : i32
    return %c0_i32, %c0_i32_0 : i32, i32
  }
  func.func @transform_1(%arg0: i32) -> (i32, i32, i32) {
    %c0_i32 = arith.constant 0 : i32
    %c0_i32_0 = arith.constant 0 : i32
    %c0_i32_1 = arith.constant 0 : i32
    return %arg0, %c0_i32, %c0_i32_0 : i32, i32, i32
  }
  func.func @transform_2(%arg0: i32) -> (i32, i32, i32) {
    %c0_i32 = arith.constant 0 : i32
    %c0_i32_0 = arith.constant 0 : i32
    %c0_i32_1 = arith.constant 0 : i32
    return %arg0, %c0_i32, %c0_i32_0 : i32, i32, i32
  }
}

</mosaic_0001>

<llo_original>
// kernel: tpu_custom_call.1
$region0: #{tpu_custom_call.1}
  #allocation0 [shape = 'u32[]', space=smem, size = 0x4, offset = 0x4, fixed_abs, tag = 'smem constant byte address 0x4 - core index']
  #allocation1 [shape = 'u32[144,128]{1,0:T(1,128)}', space=vmem, size = 0x12000, scoped, tag = 'internal scratch']
  %s0 = inlined_call_operand.vmem [shape: f32[38,32], index: 0, kind: input, shape index: {}]
  %s1 = inlined_call_operand.vmem [shape: f32[2,32,128], index: 1, kind: input, shape index: {}]
  %s2 = inlined_call_operand.hbm [shape: f32[2,32,128], index: 2, kind: output, shape index: {}]
  %s3 = sld [smem:[#allocation0]]
  $region41: #{tpu_custom_call.1} parent=0
    _
  %s5 = ssub.s32 1, %s3
  %s6 = scalar_select 0, %s5, %s3
  $region1: #{tpu_custom_call.1} parent=0
    #allocation2 [shape = 'u8[32768]{0}', space=vmem, size = 0x8000, scoped, tag = 'output window, operand 0']
    #allocation3 [shape = 's32[2]{0}', space=sflag, size = 0x8, scoped, tag = 'scoped memory for tpu_custom_call.1']
    %7 = vsyncpa [#allocation3], 0
    %s8 = scalar_lea.sflag [#allocation3], 1
    %9 = vsyncpa %s8, 0
    loop: start=0, step=1, limit=4
    $region2: #{tpu_custom_call.1} parent=1 // loop_pre_header
      _
    $region3: #{tpu_custom_call.1} parent=1 // loop_header
      %s11 = sphi 0, %s15
      %p12 = scmp.ge.s32.totalorder %s11, 4
      %s19 = sphi 0, %s19
      %s21 = sphi 0, %s19
      %s22 = sphi 0, %s21
      %s36 = sphi 0, %s22
      %s42 = sphi 0, %s44
      %s45 = sphi 0, %s42
      %s46 = sphi 0, %s45
      %s62 = sphi 0, %s46
      %s68 = sphi 0, %s70
      %s71 = sphi 0, %s68
      %s72 = sphi 0, %s71
      %s88 = sphi 0, %s72
    $region4: #{tpu_custom_call.1} parent=1 // loop_header_branch
      %14 = sbr.rel (%p12) target = $region8
    $region5: #{tpu_custom_call.1} parent=1 // loop_body
      %s16 = ssub.s32 %s11, 1
      %s17 = ssub.s32 %s11, 2
      %s18 = sadd.s32 %s11, 1
      %s20 = sadd.s32 %s19, 1
      %p23 = scmp.eq.s32.totalorder %s11, 1
      %p24 = scmp.ne.s32.totalorder %s19, %s21
      %p25 = scmp.eq.s32.totalorder %s11, 0
      %p26 = por %p24, %p25
      %p27 = scmp.ne.s32.totalorder %s19, %s21
      %p28 = scmp.eq.s32.totalorder %s16, 1
      %p29 = por %p27, %p28
      %p30 = scmp.ne.s32.totalorder %s21, %s22
      %p31 = scmp.eq.s32.totalorder %s16, 0
      %p32 = por %p30, %p31
      %p33 = scmp.ne.s32.totalorder %s21, %s22
      %p34 = scmp.eq.s32.totalorder %s17, 1
      %p35 = por %p33, %p34
      %p37 = scmp.ne.s32.totalorder %s22, %s36
      %p38 = scmp.eq.s32.totalorder %s17, 0
      %p39 = por %p37, %p38
      %s40 = ssub.s32 %s11, %s18
      %p41 = scmp.eq.s32.totalorder %s40, 0
      %s43 = sadd.s32 %s42, 1
      %s44 = scalar_select %p41, %s42, %s43
      %p47 = pneg %p41
      %p48 = scmp.eq.s32.totalorder %s11, 1
      %p49 = por %p47, %p48
      %p50 = scmp.ne.s32.totalorder %s42, %s45
      %p51 = scmp.eq.s32.totalorder %s11, 0
      %p52 = por %p50, %p51
      %p53 = scmp.ne.s32.totalorder %s42, %s45
      %p54 = scmp.eq.s32.totalorder %s16, 1
      %p55 = por %p53, %p54
      %p56 = scmp.ne.s32.totalorder %s45, %s46
      %p57 = scmp.eq.s32.totalorder %s16, 0
      %p58 = por %p56, %p57
      %p59 = scmp.ne.s32.totalorder %s45, %s46
      %p60 = scmp.eq.s32.totalorder %s17, 1
      %p61 = por %p59, %p60
      %p63 = scmp.ne.s32.totalorder %s46, %s62
      %p64 = scmp.eq.s32.totalorder %s17, 0
      %p65 = por %p63, %p64
      %s66 = ssub.s32 %s11, %s18
      %p67 = scmp.eq.s32.totalorder %s66, 0
      %s69 = sadd.s32 %s68, 1
      %s70 = scalar_select %p67, %s68, %s69
      %p73 = pneg %p67
      %p74 = scmp.eq.s32.totalorder %s11, 1
      %p75 = por %p73, %p74
      %p76 = scmp.ne.s32.totalorder %s68, %s71
      %p77 = scmp.eq.s32.totalorder %s11, 0
      %p78 = por %p76, %p77
      %p79 = scmp.ne.s32.totalorder %s68, %s71
      %p80 = scmp.eq.s32.totalorder %s16, 1
      %p81 = por %p79, %p80
      %p82 = scmp.ne.s32.totalorder %s71, %s72
      %p83 = scmp.eq.s32.totalorder %s16, 0
      %p84 = por %p82, %p83
      %p85 = scmp.ne.s32.totalorder %s71, %s72
      %p86 = scmp.eq.s32.totalorder %s17, 1
      %p87 = por %p85, %p86
      %p89 = scmp.ne.s32.totalorder %s72, %s88
      %p90 = scmp.eq.s32.totalorder %s17, 0
      %p91 = por %p89, %p90
      %p92 = scmp.le.s32.totalorder 1, %s11
      %p93 = scmp.lt.s32.totalorder %s11, 3
      %p94 = pnand %p92, %p93
      %p95 = pneg %p94
      // Predicated region
      $region9: #{tpu_custom_call.1} parent=5 // pred_check
        _
      $region10: #{tpu_custom_call.1} parent=5 // pred_check_branch
        %97 = sbr.rel (%p94) target = $region12
      $region11: #{tpu_custom_call.1} parent=5 // pred_region
        %s98 = ssub.s32 %s11, 1
        // Predicated region
        $region13: #{tpu_custom_call.1} parent=11 // pred_check
          %p99 = pneg %p32
        $region14: #{tpu_custom_call.1} parent=11 // pred_check_branch
          %101 = sbr.rel (%p99) target = $region16
        $region15: #{tpu_custom_call.1} parent=11 // pred_region
          _
        $region16: #{tpu_custom_call.1} parent=11 // pred_fallthru
          _
      $region12: #{tpu_custom_call.1} parent=5 // pred_fallthru
        _
      %p102 = scmp.lt.s32.totalorder %s11, 2
      // Predicated region
      $region17: #{tpu_custom_call.1} parent=5 // pred_check
        %p103 = pneg %p102
      $region18: #{tpu_custom_call.1} parent=5 // pred_check_branch
        %105 = sbr.rel (%p103) target = $region20
      $region19: #{tpu_custom_call.1} parent=5 // pred_region
        // Predicated region
        $region21: #{tpu_custom_call.1} parent=19 // pred_check
          %p106 = pneg %p52
        $region22: #{tpu_custom_call.1} parent=19 // pred_check_branch
          %108 = sbr.rel (%p106) target = $region24
        $region23: #{tpu_custom_call.1} parent=19 // pred_region
          %p109 = scmp.lt.s32.totalorder %s11, 1
          %s110 = scalar_select %p109, %s11, 1
          %s111 = smul.addr %s110, 4
          %s112 = smul.addr %s111, 8
          %s113 = scalar_lea.vmem %s1, %s112
        $region24: #{tpu_custom_call.1} parent=19 // pred_fallthru
          _
      $region20: #{tpu_custom_call.1} parent=5 // pred_fallthru
        _
      %p114 = scmp.le.s32.totalorder 1, %s11
      %p115 = scmp.lt.s32.totalorder %s11, 3
      %p116 = pnand %p114, %p115
      %p117 = pneg %p116
      // Predicated region
      $region25: #{tpu_custom_call.1} parent=5 // pred_check
        _
      $region26: #{tpu_custom_call.1} parent=5 // pred_check_branch
        %119 = sbr.rel (%p116) target = $region28
      $region27: #{tpu_custom_call.1} parent=5 // pred_region
        %s120 = ssub.s32 %s11, 1
        %p121 = pneg %p32
        %p122 = pneg %p29
        %p123 = scmp.lt.s32.totalorder %s16, 1
        %s124 = scalar_select %p123, %s16, 1
        %s125 = smul.addr %s124, 4
        %s126 = smul.addr %s125, 8
        %s127 = scalar_lea.vmem %s1, %s126
        %p128 = pneg %p58
        %p129 = pneg %p55
        %p130 = pneg %p84
        %p131 = pneg %p81
        %s132 = sand.u32 %s71, 1
        %s133 = scalar_lea.sflag [#allocation3], %s132
        %s134 = sand.u32 %s71, 1
        %s135 = smul.addr %s134, 32
        %s136 = scalar_lea.vmem [#allocation2], %s135
        %p137 = scmp.lt.s32.totalorder %s16, 1
        %s138 = scalar_select %p137, %s16, 1
        %s139 = smul.addr %s138, 4
        %s140 = smul.addr %s139, 8
        %s141 = scalar_lea.vmem %s1, %s140
        %v142 = vld [vmem:[%s141] sm:$0xff]
        %v143 = vld [vmem:[%s141 + $0x8] sm:$0xff]
        %v144 = vld [vmem:[%s141 + $0x10] sm:$0xff]
        %v145 = vld [vmem:[%s141 + $0x18] sm:$0xff]
        %v146 = vld [vmem:[%s0] sm:$0xff]
        %v147 = vld [vmem:[%s0 + $0x8] sm:$0xff]
        %v148 = vld [vmem:[%s0 + $0x10] sm:$0xff]
        %v149 = vld [vmem:[%s0 + $0x18] sm:$0xff]
        %v150 = vld [vmem:[%s0 + $0x20] sm:$0x3f]
        %151 = vadd.xlane.f32.xlu0 %v142
        %v152 = vpop.xlane.xlu0 %151
        %153 = vadd.xlane.f32.xlu0 %v143
        %v154 = vpop.xlane.xlu0 %153
        %155 = vadd.xlane.f32.xlu0 %v144
        %v156 = vpop.xlane.xlu0 %155
        %157 = vadd.xlane.f32.xlu0 %v145
        %v158 = vpop.xlane.xlu0 %157
        %v159 = vmul.f32 %v152, 0.0078125
        %v160 = vmul.f32 %v154, 0.0078125
        %v161 = vmul.f32 %v156, 0.0078125
        %v162 = vmul.f32 %v158, 0.0078125
        %v164 = vlaneseq
        %v165 = vshrl.u32 %v164, 7
        %v166 = vsub.s32 0, %v165
        %v167 = vrot.slane %v146, %v166
        %169 = vbcast.lane.b32.xlu0 %v167, 256
        %v170 = vpop.permute.xlu0 %169
        %s172 = sor.u32 256, 8
        %173 = vbcast.lane.b32.xlu0 %v167, %s172
        %v174 = vpop.permute.xlu0 %173
        %s176 = sor.u32 256, 16
        %177 = vbcast.lane.b32.xlu0 %v167, %s176
        %v178 = vpop.permute.xlu0 %177
        %s180 = sor.u32 256, 24
        %181 = vbcast.lane.b32.xlu0 %v167, %s180
        %v182 = vpop.permute.xlu0 %181
        %v183 = vlaneseq
        %v184 = vshrl.u32 %v183, 7
        %v185 = vsub.s32 1, %v184
        %v186 = vrot.slane %v146, %v185
        %188 = vbcast.lane.b32.xlu0 %v186, 256
        %v189 = vpop.permute.xlu0 %188
        %s191 = sor.u32 256, 8
        %192 = vbcast.lane.b32.xlu0 %v186, %s191
        %v193 = vpop.permute.xlu0 %192
        %s195 = sor.u32 256, 16
        %196 = vbcast.lane.b32.xlu0 %v186, %s195
        %v197 = vpop.permute.xlu0 %196
        %s199 = sor.u32 256, 24
        %200 = vbcast.lane.b32.xlu0 %v186, %s199
        %v201 = vpop.permute.xlu0 %200
        %v210 = vmul.f32 %v159, %v170
        %v211 = vmul.f32 %v160, %v174
        %v212 = vmul.f32 %v161, %v178
        %v213 = vmul.f32 %v162, %v182
        %v214 = vmul.f32 %v159, %v189
        %v215 = vmul.f32 %v160, %v193
        %v216 = vmul.f32 %v161, %v197
        %v217 = vmul.f32 %v162, %v201
        %226 = vset.pattern.permute.xlu0 0
        %227 = vperm.xlu0 %226, %v210
        %v228 = vpop.permute.xlu0 %227
        %229 = vset.pattern.permute.xlu0 0
        %230 = vperm.xlu0 %229, %v211
        %v231 = vpop.permute.xlu0 %230
        %232 = vset.pattern.permute.xlu0 0
        %233 = vperm.xlu0 %232, %v212
        %v234 = vpop.permute.xlu0 %233
        %235 = vset.pattern.permute.xlu0 0
        %236 = vperm.xlu0 %235, %v213
        %v237 = vpop.permute.xlu0 %236
        %238 = vset.pattern.permute.xlu0 0
        %239 = vperm.xlu0 %238, %v214
        %v240 = vpop.permute.xlu0 %239
        %241 = vset.pattern.permute.xlu0 0
        %242 = vperm.xlu0 %241, %v215
        %v243 = vpop.permute.xlu0 %242
        %244 = vset.pattern.permute.xlu0 0
        %245 = vperm.xlu0 %244, %v216
        %v246 = vpop.permute.xlu0 %245
        %247 = vset.pattern.permute.xlu0 0
        %248 = vperm.xlu0 %247, %v217
        %v249 = vpop.permute.xlu0 %248
        %v250 = vlaneseq
        %v251 = vand.u32 %v250, 127
        %v252 = vlaneseq
        %v253 = vshrl.u32 %v252, 7
        %v254 = vsub.s32 %v251, %v253
        %v255 = vrot.slane %v228, %v254
        %v256 = vadd.s32 %v251, 4294967288
        %v257 = vlaneseq
        %v258 = vshrl.u32 %v257, 7
        %v259 = vsub.s32 %v256, %v258
        %v260 = vrot.slane %v231, %v259
        %vm261 = vcmask 130112
        %v262 = vsel %vm261, %v260, %v255
        %v263 = vadd.s32 %v251, 4294967280
        %v264 = vlaneseq
        %v265 = vshrl.u32 %v264, 7
        %v266 = vsub.s32 %v263, %v265
        %v267 = vrot.slane %v234, %v266
        %vm268 = vcmask 195712
        %v269 = vsel %vm268, %v267, %v262
        %v270 = vadd.s32 %v251, 4294967272
        %v271 = vlaneseq
        %v272 = vshrl.u32 %v271, 7
        %v273 = vsub.s32 %v270, %v272
        %v274 = vrot.slane %v237, %v273
        %vm275 = vcmask 261312
        %v276 = vsel %vm275, %v274, %v269
        %v277 = vlaneseq
        %v278 = vshrl.u32 %v277, 7
        %v279 = vsub.s32 %v251, %v278
        %v280 = vrot.slane %v240, %v279
        %v281 = vlaneseq
        %v282 = vshrl.u32 %v281, 7
        %v283 = vsub.s32 %v256, %v282
        %v284 = vrot.slane %v243, %v283
        %v285 = vsel %vm261, %v284, %v280
        %v286 = vlaneseq
        %v287 = vshrl.u32 %v286, 7
        %v288 = vsub.s32 %v263, %v287
        %v289 = vrot.slane %v246, %v288
        %v290 = vsel %vm268, %v289, %v285
        %v291 = vlaneseq
        %v292 = vshrl.u32 %v291, 7
        %v293 = vsub.s32 %v270, %v292
        %v294 = vrot.slane %v249, %v293
        %v295 = vsel %vm275, %v294, %v290
        %vm296 = vcmask 1041409
        %v297 = vsel %vm296, %v295, %v276
        %vm299 = vcmask 254976
        %v300 = vsel %vm299, %v297, 0.0
        %301 = vadd.xlane.f32.xlu0 %v300
        %v302 = vpop.xlane.xlu0 %301
        %v304 = vlaneseq
        %v305 = vshrl.u32 %v304, 7
        %v306 = vsub.s32 2, %v305
        %v307 = vrot.slane %v150, %v306
        %309 = vbcast.lane.b32.xlu0 %v307, 256
        %v310 = vpop.permute.xlu0 %309
        %v312 = vadd.f32 %v302, %v310
        %v313 = vmax.f32 %v312, 0.0
        %v317 = vlaneseq
        %v318 = vshrl.u32 %v317, 7
        %v319 = vsub.s32 2, %v318
        %v320 = vrot.slane %v146, %v319
        %322 = vbcast.lane.b32.xlu0 %v320, 256
        %v323 = vpop.permute.xlu0 %322
        %v324 = vlaneseq
        %v325 = vshrl.u32 %v324, 7
        %v326 = vsub.s32 3, %v325
        %v327 = vrot.slane %v146, %v326
        %329 = vbcast.lane.b32.xlu0 %v327, 256
        %v330 = vpop.permute.xlu0 %329
        %v331 = vlaneseq
        %v332 = vshrl.u32 %v331, 7
        %v333 = vsub.s32 4, %v332
        %v334 = vrot.slane %v146, %v333
        %336 = vbcast.lane.b32.xlu0 %v334, 256
        %v337 = vpop.permute.xlu0 %336
        %v338 = vlaneseq
        %v339 = vshrl.u32 %v338, 7
        %v340 = vsub.s32 5, %v339
        %v341 = vrot.slane %v146, %v340
        %343 = vbcast.lane.b32.xlu0 %v341, 256
        %v344 = vpop.permute.xlu0 %343
        %v345 = vlaneseq
        %v346 = vshrl.u32 %v345, 7
        %v347 = vsub.s32 6, %v346
        %v348 = vrot.slane %v146, %v347
        %350 = vbcast.lane.b32.xlu0 %v348, 256
        %v351 = vpop.permute.xlu0 %350
        %v352 = vlaneseq
        %v353 = vshrl.u32 %v352, 7
        %v354 = vsub.s32 7, %v353
        %v355 = vrot.slane %v146, %v354
        %357 = vbcast.lane.b32.xlu0 %v355, 256
        %v358 = vpop.permute.xlu0 %357
        %v359 = vlaneseq
        %v360 = vshrl.u32 %v359, 7
        %v361 = vsub.s32 0, %v360
        %v362 = vrot.slane %v147, %v361
        %364 = vbcast.lane.b32.xlu0 %v362, 256
        %v365 = vpop.permute.xlu0 %364
        %v366 = vlaneseq
        %v367 = vshrl.u32 %v366, 7
        %v368 = vsub.s32 1, %v367
        %v369 = vrot.slane %v147, %v368
        %371 = vbcast.lane.b32.xlu0 %v369, 256
        %v372 = vpop.permute.xlu0 %371
        %v373 = vlaneseq
        %v374 = vshrl.u32 %v373, 7
        %v375 = vsub.s32 2, %v374
        %v376 = vrot.slane %v147, %v375
        %378 = vbcast.lane.b32.xlu0 %v376, 256
        %v379 = vpop.permute.xlu0 %378
        %v380 = vlaneseq
        %v381 = vshrl.u32 %v380, 7
        %v382 = vsub.s32 3, %v381
        %v383 = vrot.slane %v147, %v382
        %385 = vbcast.lane.b32.xlu0 %v383, 256
        %v386 = vpop.permute.xlu0 %385
        %v387 = vlaneseq
        %v388 = vshrl.u32 %v387, 7
        %v389 = vsub.s32 4, %v388
        %v390 = vrot.slane %v147, %v389
        %392 = vbcast.lane.b32.xlu0 %v390, 256
        %v393 = vpop.permute.xlu0 %392
        %v394 = vlaneseq
        %v395 = vshrl.u32 %v394, 7
        %v396 = vsub.s32 5, %v395
        %v397 = vrot.slane %v147, %v396
        %399 = vbcast.lane.b32.xlu0 %v397, 256
        %v400 = vpop.permute.xlu0 %399
        %v401 = vlaneseq
        %v402 = vshrl.u32 %v401, 7
        %v403 = vsub.s32 6, %v402
        %v404 = vrot.slane %v147, %v403
        %406 = vbcast.lane.b32.xlu0 %v404, 256
        %v407 = vpop.permute.xlu0 %406
        %v408 = vlaneseq
        %v409 = vshrl.u32 %v408, 7
        %v410 = vsub.s32 7, %v409
        %v411 = vrot.slane %v147, %v410
        %413 = vbcast.lane.b32.xlu0 %v411, 256
        %v414 = vpop.permute.xlu0 %413
        %v415 = vlaneseq
        %v416 = vshrl.u32 %v415, 7
        %v417 = vsub.s32 0, %v416
        %v418 = vrot.slane %v148, %v417
        %420 = vbcast.lane.b32.xlu0 %v418, 256
        %v421 = vpop.permute.xlu0 %420
        %v422 = vlaneseq
        %v423 = vshrl.u32 %v422, 7
        %v424 = vsub.s32 1, %v423
        %v425 = vrot.slane %v148, %v424
        %427 = vbcast.lane.b32.xlu0 %v425, 256
        %v428 = vpop.permute.xlu0 %427
        %v429 = vlaneseq
        %v430 = vshrl.u32 %v429, 7
        %v431 = vsub.s32 2, %v430
        %v432 = vrot.slane %v148, %v431
        %434 = vbcast.lane.b32.xlu0 %v432, 256
        %v435 = vpop.permute.xlu0 %434
        %v436 = vlaneseq
        %v437 = vshrl.u32 %v436, 7
        %v438 = vsub.s32 3, %v437
        %v439 = vrot.slane %v148, %v438
        %441 = vbcast.lane.b32.xlu0 %v439, 256
        %v442 = vpop.permute.xlu0 %441
        %v443 = vlaneseq
        %v444 = vshrl.u32 %v443, 7
        %v445 = vsub.s32 4, %v444
        %v446 = vrot.slane %v148, %v445
        %448 = vbcast.lane.b32.xlu0 %v446, 256
        %v449 = vpop.permute.xlu0 %448
        %v450 = vlaneseq
        %v451 = vshrl.u32 %v450, 7
        %v452 = vsub.s32 5, %v451
        %v453 = vrot.slane %v148, %v452
        %455 = vbcast.lane.b32.xlu0 %v453, 256
        %v456 = vpop.permute.xlu0 %455
        %v457 = vlaneseq
        %v458 = vshrl.u32 %v457, 7
        %v459 = vsub.s32 6, %v458
        %v460 = vrot.slane %v148, %v459
        %462 = vbcast.lane.b32.xlu0 %v460, 256
        %v463 = vpop.permute.xlu0 %462
        %v464 = vlaneseq
        %v465 = vshrl.u32 %v464, 7
        %v466 = vsub.s32 7, %v465
        %v467 = vrot.slane %v148, %v466
        %469 = vbcast.lane.b32.xlu0 %v467, 256
        %v470 = vpop.permute.xlu0 %469
        %v471 = vlaneseq
        %v472 = vshrl.u32 %v471, 7
        %v473 = vsub.s32 0, %v472
        %v474 = vrot.slane %v149, %v473
        %476 = vbcast.lane.b32.xlu0 %v474, 256
        %v477 = vpop.permute.xlu0 %476
        %v478 = vlaneseq
        %v479 = vshrl.u32 %v478, 7
        %v480 = vsub.s32 1, %v479
        %v481 = vrot.slane %v149, %v480
        %483 = vbcast.lane.b32.xlu0 %v481, 256
        %v484 = vpop.permute.xlu0 %483
        %v485 = vlaneseq
        %v486 = vshrl.u32 %v485, 7
        %v487 = vsub.s32 2, %v486
        %v488 = vrot.slane %v149, %v487
        %490 = vbcast.lane.b32.xlu0 %v488, 256
        %v491 = vpop.permute.xlu0 %490
        %v492 = vlaneseq
        %v493 = vshrl.u32 %v492, 7
        %v494 = vsub.s32 3, %v493
        %v495 = vrot.slane %v149, %v494
        %497 = vbcast.lane.b32.xlu0 %v495, 256
        %v498 = vpop.permute.xlu0 %497
        %v499 = vlaneseq
        %v500 = vshrl.u32 %v499, 7
        %v501 = vsub.s32 4, %v500
        %v502 = vrot.slane %v149, %v501
        %504 = vbcast.lane.b32.xlu0 %v502, 256
        %v505 = vpop.permute.xlu0 %504
        %v506 = vlaneseq
        %v507 = vshrl.u32 %v506, 7
        %v508 = vsub.s32 5, %v507
        %v509 = vrot.slane %v149, %v508
        %511 = vbcast.lane.b32.xlu0 %v509, 256
        %v512 = vpop.permute.xlu0 %511
        %v513 = vlaneseq
        %v514 = vshrl.u32 %v513, 7
        %v515 = vsub.s32 6, %v514
        %v516 = vrot.slane %v149, %v515
        %518 = vbcast.lane.b32.xlu0 %v516, 256
        %v519 = vpop.permute.xlu0 %518
        %v520 = vlaneseq
        %v521 = vshrl.u32 %v520, 7
        %v522 = vsub.s32 7, %v521
        %v523 = vrot.slane %v149, %v522
        %525 = vbcast.lane.b32.xlu0 %v523, 256
        %v526 = vpop.permute.xlu0 %525
        %v527 = vlaneseq
        %v528 = vshrl.u32 %v527, 7
        %v529 = vsub.s32 0, %v528
        %v530 = vrot.slane %v150, %v529
        %532 = vbcast.lane.b32.xlu0 %v530, 256
        %v533 = vpop.permute.xlu0 %532
        %v534 = vlaneseq
        %v535 = vshrl.u32 %v534, 7
        %v536 = vsub.s32 1, %v535
        %v537 = vrot.slane %v150, %v536
        %539 = vbcast.lane.b32.xlu0 %v537, 256
        %v540 = vpop.permute.xlu0 %539
        %v573 = vmul.f32 %v313, %v323
        %v574 = vmul.f32 %v313, %v330
        %v575 = vmul.f32 %v313, %v337
        %v576 = vmul.f32 %v313, %v344
        %v577 = vmul.f32 %v313, %v351
        %v578 = vmul.f32 %v313, %v358
        %v579 = vmul.f32 %v313, %v365
        %v580 = vmul.f32 %v313, %v372
        %v581 = vmul.f32 %v313, %v379
        %v582 = vmul.f32 %v313, %v386
        %v583 = vmul.f32 %v313, %v393
        %v584 = vmul.f32 %v313, %v400
        %v585 = vmul.f32 %v313, %v407
        %v586 = vmul.f32 %v313, %v414
        %v587 = vmul.f32 %v313, %v421
        %v588 = vmul.f32 %v313, %v428
        %v589 = vmul.f32 %v313, %v435
        %v590 = vmul.f32 %v313, %v442
        %v591 = vmul.f32 %v313, %v449
        %v592 = vmul.f32 %v313, %v456
        %v593 = vmul.f32 %v313, %v463
        %v594 = vmul.f32 %v313, %v470
        %v595 = vmul.f32 %v313, %v477
        %v596 = vmul.f32 %v313, %v484
        %v597 = vmul.f32 %v313, %v491
        %v598 = vmul.f32 %v313, %v498
        %v599 = vmul.f32 %v313, %v505
        %v600 = vmul.f32 %v313, %v512
        %v601 = vmul.f32 %v313, %v519
        %v602 = vmul.f32 %v313, %v526
        %v603 = vmul.f32 %v313, %v533
        %v604 = vmul.f32 %v313, %v540
        %637 = vset.pattern.permute.xlu0 0
        %638 = vperm.xlu0 %637, %v573
        %v639 = vpop.permute.xlu0 %638
        %640 = vset.pattern.permute.xlu0 0
        %641 = vperm.xlu0 %640, %v574
        %v642 = vpop.permute.xlu0 %641
        %643 = vset.pattern.permute.xlu0 0
        %644 = vperm.xlu0 %643, %v575
        %v645 = vpop.permute.xlu0 %644
        %646 = vset.pattern.permute.xlu0 0
        %647 = vperm.xlu0 %646, %v576
        %v648 = vpop.permute.xlu0 %647
        %649 = vset.pattern.permute.xlu0 0
        %650 = vperm.xlu0 %649, %v577
        %v651 = vpop.permute.xlu0 %650
        %652 = vset.pattern.permute.xlu0 0
        %653 = vperm.xlu0 %652, %v578
        %v654 = vpop.permute.xlu0 %653
        %655 = vset.pattern.permute.xlu0 0
        %656 = vperm.xlu0 %655, %v579
        %v657 = vpop.permute.xlu0 %656
        %658 = vset.pattern.permute.xlu0 0
        %659 = vperm.xlu0 %658, %v580
        %v660 = vpop.permute.xlu0 %659
        %661 = vset.pattern.permute.xlu0 0
        %662 = vperm.xlu0 %661, %v581
        %v663 = vpop.permute.xlu0 %662
        %664 = vset.pattern.permute.xlu0 0
        %665 = vperm.xlu0 %664, %v582
        %v666 = vpop.permute.xlu0 %665
        %667 = vset.pattern.permute.xlu0 0
        %668 = vperm.xlu0 %667, %v583
        %v669 = vpop.permute.xlu0 %668
        %670 = vset.pattern.permute.xlu0 0
        %671 = vperm.xlu0 %670, %v584
        %v672 = vpop.permute.xlu0 %671
        %673 = vset.pattern.permute.xlu0 0
        %674 = vperm.xlu0 %673, %v585
        %v675 = vpop.permute.xlu0 %674
        %676 = vset.pattern.permute.xlu0 0
        %677 = vperm.xlu0 %676, %v586
        %v678 = vpop.permute.xlu0 %677
        %679 = vset.pattern.permute.xlu0 0
        %680 = vperm.xlu0 %679, %v587
        %v681 = vpop.permute.xlu0 %680
        %682 = vset.pattern.permute.xlu0 0
        %683 = vperm.xlu0 %682, %v588
        %v684 = vpop.permute.xlu0 %683
        %685 = vset.pattern.permute.xlu0 0
        %686 = vperm.xlu0 %685, %v589
        %v687 = vpop.permute.xlu0 %686
        %688 = vset.pattern.permute.xlu0 0
        %689 = vperm.xlu0 %688, %v590
        %v690 = vpop.permute.xlu0 %689
        %691 = vset.pattern.permute.xlu0 0
        %692 = vperm.xlu0 %691, %v591
        %v693 = vpop.permute.xlu0 %692
        %694 = vset.pattern.permute.xlu0 0
        %695 = vperm.xlu0 %694, %v592
        %v696 = vpop.permute.xlu0 %695
        %697 = vset.pattern.permute.xlu0 0
        %698 = vperm.xlu0 %697, %v593
        %v699 = vpop.permute.xlu0 %698
        %700 = vset.pattern.permute.xlu0 0
        %701 = vperm.xlu0 %700, %v594
        %v702 = vpop.permute.xlu0 %701
        %703 = vset.pattern.permute.xlu0 0
        %704 = vperm.xlu0 %703, %v595
        %v705 = vpop.permute.xlu0 %704
        %706 = vset.pattern.permute.xlu0 0
        %707 = vperm.xlu0 %706, %v596
        %v708 = vpop.permute.xlu0 %707
        %709 = vset.pattern.permute.xlu0 0
        %710 = vperm.xlu0 %709, %v597
        %v711 = vpop.permute.xlu0 %710
        %712 = vset.pattern.permute.xlu0 0
        %713 = vperm.xlu0 %712, %v598
        %v714 = vpop.permute.xlu0 %713
        %715 = vset.pattern.permute.xlu0 0
        %716 = vperm.xlu0 %715, %v599
        %v717 = vpop.permute.xlu0 %716
        %718 = vset.pattern.permute.xlu0 0
        %719 = vperm.xlu0 %718, %v600
        %v720 = vpop.permute.xlu0 %719
        %721 = vset.pattern.permute.xlu0 0
        %722 = vperm.xlu0 %721, %v601
        %v723 = vpop.permute.xlu0 %722
        %724 = vset.pattern.permute.xlu0 0
        %725 = vperm.xlu0 %724, %v602
        %v726 = vpop.permute.xlu0 %725
        %727 = vset.pattern.permute.xlu0 0
        %728 = vperm.xlu0 %727, %v603
        %v729 = vpop.permute.xlu0 %728
        %730 = vset.pattern.permute.xlu0 0
        %731 = vperm.xlu0 %730, %v604
        %v732 = vpop.permute.xlu0 %731
        %v733 = vlaneseq
        %v734 = vshrl.u32 %v733, 7
        %v735 = vsub.s32 %v251, %v734
        %v736 = vrot.slane %v639, %v735
        %v737 = vlaneseq
        %v738 = vshrl.u32 %v737, 7
        %v739 = vsub.s32 %v251, %v738
        %v740 = vrot.slane %v642, %v739
        %v741 = vlaneseq
        %v742 = vshrl.u32 %v741, 7
        %v743 = vsub.s32 %v251, %v742
        %v744 = vrot.slane %v645, %v743
        %v745 = vlaneseq
        %v746 = vshrl.u32 %v745, 7
        %v747 = vsub.s32 %v251, %v746
        %v748 = vrot.slane %v648, %v747
        %v749 = vlaneseq
        %v750 = vshrl.u32 %v749, 7
        %v751 = vsub.s32 %v251, %v750
        %v752 = vrot.slane %v651, %v751
        %v753 = vlaneseq
        %v754 = vshrl.u32 %v753, 7
        %v755 = vsub.s32 %v251, %v754
        %v756 = vrot.slane %v654, %v755
        %v757 = vlaneseq
        %v758 = vshrl.u32 %v757, 7
        %v759 = vsub.s32 %v251, %v758
        %v760 = vrot.slane %v657, %v759
        %v761 = vlaneseq
        %v762 = vshrl.u32 %v761, 7
        %v763 = vsub.s32 %v251, %v762
        %v764 = vrot.slane %v660, %v763
        %v765 = vlaneseq
        %v766 = vshrl.u32 %v765, 7
        %v767 = vsub.s32 %v251, %v766
        %v768 = vrot.slane %v663, %v767
        %v769 = vlaneseq
        %v770 = vshrl.u32 %v769, 7
        %v771 = vsub.s32 %v251, %v770
        %v772 = vrot.slane %v666, %v771
        %v773 = vlaneseq
        %v774 = vshrl.u32 %v773, 7
        %v775 = vsub.s32 %v251, %v774
        %v776 = vrot.slane %v669, %v775
        %v777 = vlaneseq
        %v778 = vshrl.u32 %v777, 7
        %v779 = vsub.s32 %v251, %v778
        %v780 = vrot.slane %v672, %v779
        %v781 = vlaneseq
        %v782 = vshrl.u32 %v781, 7
        %v783 = vsub.s32 %v251, %v782
        %v784 = vrot.slane %v675, %v783
        %v785 = vlaneseq
        %v786 = vshrl.u32 %v785, 7
        %v787 = vsub.s32 %v251, %v786
        %v788 = vrot.slane %v678, %v787
        %v789 = vlaneseq
        %v790 = vshrl.u32 %v789, 7
        %v791 = vsub.s32 %v251, %v790
        %v792 = vrot.slane %v681, %v791
        %v793 = vlaneseq
        %v794 = vshrl.u32 %v793, 7
        %v795 = vsub.s32 %v251, %v794
        %v796 = vrot.slane %v684, %v795
        %v797 = vlaneseq
        %v798 = vshrl.u32 %v797, 7
        %v799 = vsub.s32 %v251, %v798
        %v800 = vrot.slane %v687, %v799
        %v801 = vlaneseq
        %v802 = vshrl.u32 %v801, 7
        %v803 = vsub.s32 %v251, %v802
        %v804 = vrot.slane %v690, %v803
        %v805 = vlaneseq
        %v806 = vshrl.u32 %v805, 7
        %v807 = vsub.s32 %v251, %v806
        %v808 = vrot.slane %v693, %v807
        %v809 = vlaneseq
        %v810 = vshrl.u32 %v809, 7
        %v811 = vsub.s32 %v251, %v810
        %v812 = vrot.slane %v696, %v811
        %v813 = vlaneseq
        %v814 = vshrl.u32 %v813, 7
        %v815 = vsub.s32 %v251, %v814
        %v816 = vrot.slane %v699, %v815
        %v817 = vlaneseq
        %v818 = vshrl.u32 %v817, 7
        %v819 = vsub.s32 %v251, %v818
        %v820 = vrot.slane %v702, %v819
        %v821 = vlaneseq
        %v822 = vshrl.u32 %v821, 7
        %v823 = vsub.s32 %v251, %v822
        %v824 = vrot.slane %v705, %v823
        %v825 = vlaneseq
        %v826 = vshrl.u32 %v825, 7
        %v827 = vsub.s32 %v251, %v826
        %v828 = vrot.slane %v708, %v827
        %v829 = vlaneseq
        %v830 = vshrl.u32 %v829, 7
        %v831 = vsub.s32 %v251, %v830
        %v832 = vrot.slane %v711, %v831
        %v833 = vlaneseq
        %v834 = vshrl.u32 %v833, 7
        %v835 = vsub.s32 %v251, %v834
        %v836 = vrot.slane %v714, %v835
        %v837 = vlaneseq
        %v838 = vshrl.u32 %v837, 7
        %v839 = vsub.s32 %v251, %v838
        %v840 = vrot.slane %v717, %v839
        %v841 = vlaneseq
        %v842 = vshrl.u32 %v841, 7
        %v843 = vsub.s32 %v251, %v842
        %v844 = vrot.slane %v720, %v843
        %v845 = vlaneseq
        %v846 = vshrl.u32 %v845, 7
        %v847 = vsub.s32 %v251, %v846
        %v848 = vrot.slane %v723, %v847
        %v849 = vlaneseq
        %v850 = vshrl.u32 %v849, 7
        %v851 = vsub.s32 %v251, %v850
        %v852 = vrot.slane %v726, %v851
        %v853 = vlaneseq
        %v854 = vshrl.u32 %v853, 7
        %v855 = vsub.s32 %v251, %v854
        %v856 = vrot.slane %v729, %v855
        %v857 = vlaneseq
        %v858 = vshrl.u32 %v857, 7
        %v859 = vsub.s32 %v251, %v858
        %v860 = vrot.slane %v732, %v859
        %v861 = vsel %vm296, %v740, %v736
        %vm862 = vcmask 1042434
        %v863 = vsel %vm862, %v744, %v861
        %vm864 = vcmask 1043459
        %v865 = vsel %vm864, %v748, %v863
        %vm866 = vcmask 1044484
        %v867 = vsel %vm866, %v752, %v865
        %vm868 = vcmask 1045509
        %v869 = vsel %vm868, %v756, %v867
        %vm870 = vcmask 1046534
        %v871 = vsel %vm870, %v760, %v869
        %vm872 = vcmask 1047559
        %v873 = vsel %vm872, %v764, %v871
        %v874 = vsel %vm296, %v772, %v768
        %v875 = vsel %vm862, %v776, %v874
        %v876 = vsel %vm864, %v780, %v875
        %v877 = vsel %vm866, %v784, %v876
        %v878 = vsel %vm868, %v788, %v877
        %v879 = vsel %vm870, %v792, %v878
        %v880 = vsel %vm872, %v796, %v879
        %v881 = vsel %vm296, %v804, %v800
        %v882 = vsel %vm862, %v808, %v881
        %v883 = vsel %vm864, %v812, %v882
        %v884 = vsel %vm866, %v816, %v883
        %v885 = vsel %vm868, %v820, %v884
        %v886 = vsel %vm870, %v824, %v885
        %v887 = vsel %vm872, %v828, %v886
        %v888 = vsel %vm296, %v836, %v832
        %v889 = vsel %vm862, %v840, %v888
        %v890 = vsel %vm864, %v844, %v889
        %v891 = vsel %vm866, %v848, %v890
        %v892 = vsel %vm868, %v852, %v891
        %v893 = vsel %vm870, %v856, %v892
        %v894 = vsel %vm872, %v860, %v893
        %vm899 = vcmask 15360
        %v900 = vsel %vm899, %v873, 0.0
        %901 = vadd.xlane.f32.xlu0 %v900
        %v902 = vpop.xlane.xlu0 %901
        %v903 = vsel %vm899, %v880, 0.0
        %904 = vadd.xlane.f32.xlu0 %v903
        %v905 = vpop.xlane.xlu0 %904
        %v906 = vsel %vm899, %v887, 0.0
        %907 = vadd.xlane.f32.xlu0 %v906
        %v908 = vpop.xlane.xlu0 %907
        %v909 = vsel %vm899, %v894, 0.0
        %910 = vadd.xlane.f32.xlu0 %v909
        %v911 = vpop.xlane.xlu0 %910
        %v912 = vlaneseq
        %v913 = vshrl.u32 %v912, 7
        %v914 = vsub.s32 3, %v913
        %v915 = vrot.slane %v150, %v914
        %917 = vbcast.lane.b32.xlu0 %v915, 256
        %v918 = vpop.permute.xlu0 %917
        %s920 = sor.u32 256, 8
        %921 = vbcast.lane.b32.xlu0 %v915, %s920
        %v922 = vpop.permute.xlu0 %921
        %s924 = sor.u32 256, 16
        %925 = vbcast.lane.b32.xlu0 %v915, %s924
        %v926 = vpop.permute.xlu0 %925
        %s928 = sor.u32 256, 24
        %929 = vbcast.lane.b32.xlu0 %v915, %s928
        %v930 = vpop.permute.xlu0 %929
        %v935 = vadd.f32 %v902, %v918
        %v936 = vadd.f32 %v905, %v922
        %v937 = vadd.f32 %v908, %v926
        %v938 = vadd.f32 %v911, %v930
        %v939 = vxor.u32 %v935, 2147483648
        %v940 = vxor.u32 %v936, 2147483648
        %v941 = vxor.u32 %v937, 2147483648
        %v942 = vxor.u32 %v938, 2147483648
        %v943 = vmul.f32 %v939, 1.442695
        %v944 = vpow.pop %v943
        %v945 = vmul.f32 %v940, 1.442695
        %v946 = vpow.pop %v945
        %v947 = vmul.f32 %v941, 1.442695
        %v948 = vpow.pop %v947
        %v949 = vmul.f32 %v942, 1.442695
        %v950 = vpow.pop %v949
        %v951 = vadd.f32 %v944, 1.0
        %v952 = vadd.f32 %v946, 1.0
        %v953 = vadd.f32 %v948, 1.0
        %v954 = vadd.f32 %v950, 1.0
        %v955 = vrcp.pop %v951
        %v956 = vmul.f32 1.0, %v955
        %v957 = vrcp.pop %v952
        %v958 = vmul.f32 1.0, %v957
        %v959 = vrcp.pop %v953
        %v960 = vmul.f32 1.0, %v959
        %v961 = vrcp.pop %v954
        %v962 = vmul.f32 1.0, %v961
        %v963 = vlaneseq
        %v964 = vshrl.u32 %v963, 7
        %v965 = vsub.s32 4, %v964
        %v966 = vrot.slane %v150, %v965
        %968 = vbcast.lane.b32.xlu0 %v966, 256
        %v969 = vpop.permute.xlu0 %968
        %s971 = sor.u32 256, 8
        %972 = vbcast.lane.b32.xlu0 %v966, %s971
        %v973 = vpop.permute.xlu0 %972
        %s975 = sor.u32 256, 16
        %976 = vbcast.lane.b32.xlu0 %v966, %s975
        %v977 = vpop.permute.xlu0 %976
        %s979 = sor.u32 256, 24
        %980 = vbcast.lane.b32.xlu0 %v966, %s979
        %v981 = vpop.permute.xlu0 %980
        %v982 = vmul.f32 %v142, %v969
        %v983 = vmul.f32 %v143, %v973
        %v984 = vmul.f32 %v144, %v977
        %v985 = vmul.f32 %v145, %v981
        %v986 = vadd.f32 %v982, %v983
        %v987 = vadd.f32 %v986, %v984
        %v988 = vadd.f32 %v987, %v985
        %v989 = vrot.slane %v988, 4
        %v990 = vadd.f32 %v988, %v989
        %v991 = vrot.slane %v990, 2
        %v992 = vadd.f32 %v990, %v991
        %v993 = vrot.slane %v992, 1
        %v994 = vadd.f32 %v992, %v993
        %995 = vset.pattern.permute.xlu0 0
        %996 = vperm.xlu0 %995, %v150
        %v997 = vpop.permute.xlu0 %996
        %v999 = vadd.f32 %v994, %v997
        %v1000 = vxor.u32 %v999, 2147483648
        %v1001 = vmul.f32 %v1000, 1.442695
        %v1002 = vpow.pop %v1001
        %v1003 = vadd.f32 %v1002, 1.0
        %v1004 = vrcp.pop %v1003
        %v1005 = vmul.f32 1.0, %v1004
        %1007 = vset.pattern.permute.xlu0 0
        %1008 = vperm.xlu0 %1007, %v956
        %v1009 = vpop.permute.xlu0 %1008
        %1012 = vset.pattern.permute.xlu0 0
        %1013 = vperm.xlu0 %1012, %v958
        %v1014 = vpop.permute.xlu0 %1013
        %1017 = vset.pattern.permute.xlu0 0
        %1018 = vperm.xlu0 %1017, %v960
        %v1019 = vpop.permute.xlu0 %1018
        %1022 = vset.pattern.permute.xlu0 0
        %1023 = vperm.xlu0 %1022, %v962
        %v1024 = vpop.permute.xlu0 %1023
        %v1026 = vlaneseq
        %v1027 = vshrl.u32 %v1026, 7
        %v1028 = vsub.s32 5, %v1027
        %v1029 = vrot.slane %v1005, %v1028
        %v1030 = vadd.f32 %v1009, %v1029
        %v1031 = vadd.f32 %v1014, %v1029
        %v1032 = vadd.f32 %v1019, %v1029
        %v1033 = vadd.f32 %v1024, %v1029
        %v1034 = vmul.f32 %v142, %v1030
        %v1035 = vmul.f32 %v143, %v1031
        %v1036 = vmul.f32 %v144, %v1032
        %v1037 = vmul.f32 %v145, %v1033
        %1038 = vst [vmem:[%s136] sm:$0xff] %v1034
        %1039 = vst [vmem:[%s136 + $0x8] sm:$0xff] %v1035
        %1040 = vst [vmem:[%s136 + $0x10] sm:$0xff] %v1036
        %1041 = vst [vmem:[%s136 + $0x18] sm:$0xff] %v1037
        %s1042 = sand.u32 %s71, 1
        %s1043 = scalar_lea.sflag [#allocation3], %s1042
        %s1044 = sand.u32 %s71, 1
        %s1045 = smul.addr %s1044, 32
        %s1046 = scalar_lea.vmem [#allocation2], %s1045
        // Predicated region
        $region29: #{tpu_custom_call.1} parent=27 // pred_check
          %p1047 = pneg %p81
        $region30: #{tpu_custom_call.1} parent=27 // pred_check_branch
          %1049 = sbr.rel (%p1047) target = $region32
        $region31: #{tpu_custom_call.1} parent=27 // pred_region
          %s1051 = ssub.s32 512, 512
          %1052 = vsyncadd %s1043, %s1051
          %s1053 = smul.addr %s16, 4
          %s1054 = smul.addr %s1053, 128
          %s1055 = scalar_lea.hbm %s2, %s1054
          %s1056 = sshll.u32 %s1046, 4
          %s1057 = int_to_ptr.vmem [resolvable:$true] %s1056
          %1062 = dma.vmem_to_hbm [thread:$0]  %s1057, 512, %s1055, %s1043, 128, 128, 8
        $region32: #{tpu_custom_call.1} parent=27 // pred_fallthru
          _
      $region28: #{tpu_custom_call.1} parent=5 // pred_fallthru
        _
      %p1063 = scmp.le.s32.totalorder 2, %s11
      // Predicated region
      $region33: #{tpu_custom_call.1} parent=5 // pred_check
        %p1064 = pneg %p1063
      $region34: #{tpu_custom_call.1} parent=5 // pred_check_branch
        %1066 = sbr.rel (%p1064) target = $region36
      $region35: #{tpu_custom_call.1} parent=5 // pred_region
        %s1067 = ssub.s32 %s11, 2
        // Predicated region
        $region37: #{tpu_custom_call.1} parent=35 // pred_check
          %p1068 = pneg %p87
        $region38: #{tpu_custom_call.1} parent=35 // pred_check_branch
          %1070 = sbr.rel (%p1068) target = $region40
        $region39: #{tpu_custom_call.1} parent=35 // pred_region
          %s1071 = sand.u32 %s72, 1
          %s1072 = scalar_lea.sflag [#allocation3], %s1071
          %s1073 = sand.u32 %s72, 1
          %s1074 = smul.addr %s1073, 32
          %s1075 = scalar_lea.vmem [#allocation2], %s1074
          %1076 = dma.done %s1072, 512
        $region40: #{tpu_custom_call.1} parent=35 // pred_fallthru
          _
      $region36: #{tpu_custom_call.1} parent=5 // pred_fallthru
        _
    $region6: #{tpu_custom_call.1} parent=1 // loop_footer
      %s15 = sadd.s32 1, %s11
    $region7: #{tpu_custom_call.1} parent=1 // loop_footer_branch
      %10 = sbr.rel target = $region3
    $region8: #{tpu_custom_call.1} parent=1 // loop_exit
      _
    %1077 = vsyncpa [#allocation3], 1
    %s1078 = scalar_lea.sflag [#allocation3], 1
    %1079 = vsyncpa %s1078, 1

</llo_original>
